<compile_context>
chip_gen: v5e
topology: v5e:2x2
jax: 0.10.0
libtpu: 0.0.40
codegen_flags: <defaults>
</compile_context>

<pallas_src>
import math

import jax
import jax.numpy as jnp
from jax.experimental import pallas as pl
from jax.experimental.pallas import tpu as pltpu

LEAKY_SLOPE = 0.01        # nn.LeakyReLU() default negative_slope
PAD_C = 128               # lane-dense internal feature width (all layers padded to 128)
MAX_TILE_N = 1024         # max rows per grid step (multiple of 8)
UNROLL_LAYER_LIMIT = 4    # static-unroll the layer chain up to this depth


def _round_up(x, m):
    return ((x + m - 1) // m) * m


def _choose_tile_n(n):
    tile = min(MAX_TILE_N, _round_up(n, 8))
    # v7x: make sure mid/large batches split into >= 2 row tiles so the "parallel"
    # grid axis can shard across both TensorCores (harmless on v5e/v6e).
    if n >= 256 and pl.cdiv(n, tile) < 2:
        tile = _round_up(pl.cdiv(n, 2), 8)
    return tile


def _make_mlp_kernel(n_layers, c_in, c_out, tile_n, compute_dtype):
    """Fused MLP: chain of matmul + f32 bias (+ f32 LeakyReLU except last layer)."""
    lane_pad = PAD_C - c_in

    def kernel(x_ref, w_ref, b_ref, o_ref):
        # x_ref: (tile_n, c_in)   w_ref: (L, 128, 128)   b_ref: (L, 1, 128) f32
        # o_ref: (tile_n, c_out)
        h = x_ref[...].astype(compute_dtype)
        if lane_pad > 0:
            h = jnp.concatenate(
                [h, jnp.zeros((tile_n, lane_pad), compute_dtype)], axis=-1)

        def hidden_layer(l, h):
            y = jnp.dot(h, w_ref[l], preferred_element_type=jnp.float32)
            y = y + b_ref[l]                              # f32 bias add
            y = jnp.where(y >= 0.0, y, LEAKY_SLOPE * y)   # f32 LeakyReLU
            return y.astype(compute_dtype)

        if n_layers <= UNROLL_LAYER_LIMIT:
            for l in range(n_layers - 1):                 # static unroll (shallow)
                h = hidden_layer(l, h)
        else:
            # deep heads: fori_loop bounds live ranges / VMEM temporaries
            h = jax.lax.fori_loop(0, n_layers - 1, hidden_layer, h)

        # final linear (no activation); emit only the real c_out lanes
        y = jnp.dot(h, w_ref[n_layers - 1], preferred_element_type=jnp.float32)
        y = y + b_ref[n_layers - 1]
        o_ref[...] = y[:, :c_out].astype(o_ref.dtype)

    return kernel


def init_box_head_params(key, filters):
    """PyTorch-default-style init: U(-1/sqrt(fan_in), 1/sqrt(fan_in)).

    Returns a list of (w, b) with w stored (Cin, Cout) so the kernel does x @ w.
    Hidden layers follow `filters`; the final layer maps filters[-1] -> 4*2 = 8.
    """
    dims = list(zip(filters[:-1], filters[1:])) + [(filters[-1], 4 * 2)]
    params = []
    for cin, cout in dims:
        key, kw, kb = jax.random.split(key, 3)
        bound = 1.0 / math.sqrt(cin)
        w = jax.random.uniform(kw, (cin, cout), jnp.float32, -bound, bound)
        b = jax.random.uniform(kb, (cout,), jnp.float32, -bound, bound)
        params.append((w, b))
    return params


def pack_box_head_params(params, compute_dtype=jnp.bfloat16):
    """Zero-pad every layer to (128, 128)/(1, 128) and stack - done once, not per call.

    Default compute_dtype=bf16: halves weight DMA bytes and uses the bf16-native MXU;
    accumulation, bias add and LeakyReLU stay f32 inside the kernel.  Pass
    compute_dtype=jnp.float32 to match PyTorch f32 numerics exactly.
    """
    n_layers = len(params)
    layer_dims = [(w.shape[0], w.shape[1]) for w, _ in params]
    c_in = layer_dims[0][0]
    c_out = layer_dims[-1][1]
    assert all(ci <= PAD_C and co <= PAD_C for ci, co in layer_dims), layer_dims

    w_stack = jnp.zeros((n_layers, PAD_C, PAD_C), compute_dtype)
    b_stack = jnp.zeros((n_layers, 1, PAD_C), jnp.float32)
    for i, (w, b) in enumerate(params):
        ci, co = w.shape
        w_stack = w_stack.at[i, :ci, :co].set(w.astype(compute_dtype))
        b_stack = b_stack.at[i, 0, :co].set(b)

    return {
        "w": w_stack,
        "b": b_stack,
        "c_in": c_in,
        "c_out": c_out,
        "n_layers": n_layers,
        "layer_dims": layer_dims,
        "dtype": compute_dtype,
    }


def box_head_forward(packed, x):
    """Forward pass of BoxHead as one fused, row-tiled Pallas kernel.

    x: (N, filters[0]) float32 -> (N, 8) float32
    """
    n, c_in = x.shape
    assert c_in == packed["c_in"], (c_in, packed["c_in"])
    n_layers = packed["n_layers"]
    c_out = packed["c_out"]
    w_stack = packed["w"]
    b_stack = packed["b"]

    tile_n = _choose_tile_n(n)
    grid = (pl.cdiv(n, tile_n),)

    # Real (unpadded) work for the scheduler hint.
    flops = sum(2 * n * ci * co for ci, co in packed["layer_dims"])
    bytes_accessed = (
        x.size * x.dtype.itemsize
        + w_stack.size * w_stack.dtype.itemsize
        + b_stack.size * b_stack.dtype.itemsize
        + n * c_out * 4  # f32 output
    )

    return pl.pallas_call(
        _make_mlp_kernel(n_layers, c_in, c_out, tile_n, packed["dtype"]),
        out_shape=jax.ShapeDtypeStruct((n, c_out), jnp.float32),
        grid=grid,
        in_specs=[
            pl.BlockSpec((tile_n, c_in), lambda i: (i, 0)),               # x rows tiled, unpadded lanes
            pl.BlockSpec((n_layers, PAD_C, PAD_C), lambda i: (0, 0, 0)),  # weights resident
            pl.BlockSpec((n_layers, 1, PAD_C), lambda i: (0, 0, 0)),      # biases resident
        ],
        out_specs=pl.BlockSpec((tile_n, c_out), lambda i: (i, 0)),        # 8-lane output, no wrapper slice
        compiler_params=pltpu.CompilerParams(
            dimension_semantics=("parallel",),  # shard row tiles across TCs on v7x
        ),
        cost_estimate=pl.CostEstimate(
            flops=flops, transcendentals=0, bytes_accessed=bytes_accessed
        ),
    )(x, w_stack, b_stack)


def _reference_forward(params, x, compute_dtype):
    """Plain-JAX reference emulating the kernel's compute dtype (f32 accumulation)."""
    h = x
    n_layers = len(params)
    for i, (w, b) in enumerate(params):
        hc = h.astype(compute_dtype).astype(jnp.float32)
        wc = w.astype(compute_dtype).astype(jnp.float32)
        h = hc @ wc + b
        if i != n_layers - 1:
            h = jnp.where(h >= 0.0, h, LEAKY_SLOPE * h)
    return h


if __name__ == "__main__":
    key = jax.random.PRNGKey(0)

    # --- shallow head, f32 path (matches PyTorch numerics) -----------------------
    filters = [16, 32, 16]
    batch = 8
    key, kx, kp = jax.random.split(key, 3)
    x = jax.random.normal(kx, (batch, filters[0]), dtype=jnp.float32)
    params = init_box_head_params(kp, filters)
    packed = pack_box_head_params(params, compute_dtype=jnp.float32)

    out = jax.block_until_ready(box_head_forward(packed, x))
    assert out.shape == (batch, 4 * 2), out.shape
    assert out.dtype == jnp.float32
    ref = _reference_forward(params, x, jnp.float32)
    assert jnp.allclose(out, ref, atol=1e-4, rtol=1e-4), float(jnp.max(jnp.abs(out - ref)))

    # --- deeper head, default bf16 weights/activations (f32 accumulation) --------
    # batch=300 exercises: multi-tile grid, partial (masked) last row tile, and the
    # fori_loop layer path for deep filter lists.
    filters2 = [16, 32, 32, 32, 32, 16]
    batch2 = 300
    key, kx2, kp2 = jax.random.split(key, 3)
    x2 = jax.random.normal(kx2, (batch2, filters2[0]), dtype=jnp.float32)
    params2 = init_box_head_params(kp2, filters2)
    packed2 = pack_box_head_params(params2)  # bf16 default

    out2 = jax.block_until_ready(box_head_forward(packed2, x2))
    assert out2.shape == (batch2, 4 * 2), out2.shape
    ref2 = _reference_forward(params2, x2, jnp.bfloat16)
    assert jnp.allclose(out2, ref2, atol=2e-2, rtol=2e-2), float(jnp.max(jnp.abs(out2 - ref2)))

    print("KERNEL_OK")
</pallas_src>

<mosaic_0001>
module attributes {stable_mosaic.version = 11 : i64} {
  func.func @kernel(%arg0: i32, %arg1: memref<8x16xf32, #tpu.memory_space<vmem>>, %arg2: memref<3x128x128xf32, #tpu.memory_space<vmem>>, %arg3: memref<3x1x128xf32, #tpu.memory_space<vmem>>, %arg4: memref<8x8xf32, #tpu.memory_space<vmem>>) attributes {dimension_semantics = [#tpu.dimension_semantics<parallel>], iteration_bounds = array<i64: 1>, scalar_prefetch = 0 : i64, scratch_operands = 0 : i64, tpu.core_type = #tpu.core_type<tc>, window_params = [{transform_indices = @transform_0, window_bounds = array<i64: 8, 16>}, {pipeline_mode = #tpu.pipeline_mode<synchronous>, transform_indices = @transform_1, window_bounds = array<i64: 3, 128, 128>}, {pipeline_mode = #tpu.pipeline_mode<synchronous>, transform_indices = @transform_2, window_bounds = array<i64: 3, 1, 128>}, {transform_indices = @transform_3, window_bounds = array<i64: 8, 8>}]} {
    %c0 = arith.constant 0 : index
    %c0_0 = arith.constant 0 : index
    %0 = vector.load %arg1[%c0, %c0_0] : memref<8x16xf32, #tpu.memory_space<vmem>>, vector<8x16xf32>
    %cst = arith.constant 0.000000e+00 : f32
    %1 = vector.broadcast %cst : f32 to vector<8x112xf32>
    %2 = tpu.concatenate %0, %1 in 1 : vector<8x16xf32>, vector<8x112xf32> -> vector<8x128xf32>
    %c0_1 = arith.constant 0 : index
    %c0_2 = arith.constant 0 : index
    %c0_3 = arith.constant 0 : index
    %3 = vector.load %arg2[%c0_1, %c0_2, %c0_3] : memref<3x128x128xf32, #tpu.memory_space<vmem>>, vector<1x128x128xf32>
    %4 = vector.shape_cast %3 : vector<1x128x128xf32> to vector<128x128xf32>
    %cst_4 = arith.constant dense<0.000000e+00> : vector<8x128xf32>
    %5 = tpu.matmul %2, %4, %cst_4 {dimension_numbers = #tpu.dot_dimension_numbers<[1], [0], [0], [1], [0, 0, 1, 1], [], []>} : vector<8x128xf32>, vector<128x128xf32>, vector<8x128xf32> -> vector<8x128xf32>
    %c0_5 = arith.constant 0 : index
    %c0_6 = arith.constant 0 : index
    %c0_7 = arith.constant 0 : index
    %6 = vector.load %arg3[%c0_5, %c0_6, %c0_7] : memref<3x1x128xf32, #tpu.memory_space<vmem>>, vector<1x1x128xf32>
    %7 = vector.shape_cast %6 : vector<1x1x128xf32> to vector<1x128xf32>
    %8 = vector.broadcast %7 : vector<1x128xf32> to vector<8x128xf32>
    %9 = arith.addf %5, %8 : vector<8x128xf32>
    %cst_8 = arith.constant 0.000000e+00 : f32
    %10 = vector.broadcast %cst_8 : f32 to vector<8x128xf32>
    %11 = arith.cmpf oge, %9, %10 : vector<8x128xf32>
    %cst_9 = arith.constant 0.00999999977 : f32
    %12 = vector.broadcast %cst_9 : f32 to vector<8x128xf32>
    %13 = arith.mulf %12, %9 : vector<8x128xf32>
    %14 = arith.select %11, %9, %13 : vector<8x128xi1>, vector<8x128xf32>
    %c1 = arith.constant 1 : index
    %c0_10 = arith.constant 0 : index
    %c0_11 = arith.constant 0 : index
    %15 = vector.load %arg2[%c1, %c0_10, %c0_11] : memref<3x128x128xf32, #tpu.memory_space<vmem>>, vector<1x128x128xf32>
    %16 = vector.shape_cast %15 : vector<1x128x128xf32> to vector<128x128xf32>
    %cst_12 = arith.constant dense<0.000000e+00> : vector<8x128xf32>
    %17 = tpu.matmul %14, %16, %cst_12 {dimension_numbers = #tpu.dot_dimension_numbers<[1], [0], [0], [1], [0, 0, 1, 1], [], []>} : vector<8x128xf32>, vector<128x128xf32>, vector<8x128xf32> -> vector<8x128xf32>
    %c1_13 = arith.constant 1 : index
    %c0_14 = arith.constant 0 : index
    %c0_15 = arith.constant 0 : index
    %18 = vector.load %arg3[%c1_13, %c0_14, %c0_15] : memref<3x1x128xf32, #tpu.memory_space<vmem>>, vector<1x1x128xf32>
    %19 = vector.shape_cast %18 : vector<1x1x128xf32> to vector<1x128xf32>
    %20 = vector.broadcast %19 : vector<1x128xf32> to vector<8x128xf32>
    %21 = arith.addf %17, %20 : vector<8x128xf32>
    %cst_16 = arith.constant 0.000000e+00 : f32
    %22 = vector.broadcast %cst_16 : f32 to vector<8x128xf32>
    %23 = arith.cmpf oge, %21, %22 : vector<8x128xf32>
    %cst_17 = arith.constant 0.00999999977 : f32
    %24 = vector.broadcast %cst_17 : f32 to vector<8x128xf32>
    %25 = arith.mulf %24, %21 : vector<8x128xf32>
    %26 = arith.select %23, %21, %25 : vector<8x128xi1>, vector<8x128xf32>
    %c2 = arith.constant 2 : index
    %c0_18 = arith.constant 0 : index
    %c0_19 = arith.constant 0 : index
    %27 = vector.load %arg2[%c2, %c0_18, %c0_19] : memref<3x128x128xf32, #tpu.memory_space<vmem>>, vector<1x128x128xf32>
    %28 = vector.shape_cast %27 : vector<1x128x128xf32> to vector<128x128xf32>
    %cst_20 = arith.constant dense<0.000000e+00> : vector<8x128xf32>
    %29 = tpu.matmul %26, %28, %cst_20 {dimension_numbers = #tpu.dot_dimension_numbers<[1], [0], [0], [1], [0, 0, 1, 1], [], []>} : vector<8x128xf32>, vector<128x128xf32>, vector<8x128xf32> -> vector<8x128xf32>
    %c2_21 = arith.constant 2 : index
    %c0_22 = arith.constant 0 : index
    %c0_23 = arith.constant 0 : index
    %30 = vector.load %arg3[%c2_21, %c0_22, %c0_23] : memref<3x1x128xf32, #tpu.memory_space<vmem>>, vector<1x1x128xf32>
    %31 = vector.shape_cast %30 : vector<1x1x128xf32> to vector<1x128xf32>
    %32 = vector.broadcast %31 : vector<1x128xf32> to vector<8x128xf32>
    %33 = arith.addf %29, %32 : vector<8x128xf32>
    %34 = vector.extract_strided_slice %33 {offsets = [0, 0], sizes = [8, 8], strides = [1, 1]} : vector<8x128xf32> to vector<8x8xf32>
    %c0_24 = arith.constant 0 : index
    %c0_25 = arith.constant 0 : index
    %35 = vector.load %arg4[%c0_24, %c0_25] : memref<8x8xf32, #tpu.memory_space<vmem>>, vector<8x8xf32>
    tpu.vector_store %arg4[%c0_24, %c0_25], %34 {strides = array<i32>} : memref<8x8xf32, #tpu.memory_space<vmem>>, vector<8x8xf32>,
    return
  }
  func.func @transform_0(%arg0: i32) -> (i32, i32) {
    %c0_i32 = arith.constant 0 : i32
    %c0_i32_0 = arith.constant 0 : i32
    return %arg0, %c0_i32 : i32, i32
  }
  func.func @transform_1(%arg0: i32) -> (i32, i32, i32) {
    %c0_i32 = arith.constant 0 : i32
    %c0_i32_0 = arith.constant 0 : i32
    %c0_i32_1 = arith.constant 0 : i32
    %c0_i32_2 = arith.constant 0 : i32
    return %c0_i32, %c0_i32_0, %c0_i32_1 : i32, i32, i32
  }
  func.func @transform_2(%arg0: i32) -> (i32, i32, i32) {
    %c0_i32 = arith.constant 0 : i32
    %c0_i32_0 = arith.constant 0 : i32
    %c0_i32_1 = arith.constant 0 : i32
    %c0_i32_2 = arith.constant 0 : i32
    return %c0_i32, %c0_i32_0, %c0_i32_1 : i32, i32, i32
  }
  func.func @transform_3(%arg0: i32) -> (i32, i32) {
    %c0_i32 = arith.constant 0 : i32
    %c0_i32_0 = arith.constant 0 : i32
    return %arg0, %c0_i32 : i32, i32
  }
}

</mosaic_0001>

<llo_original>
// kernel: tpu_custom_call.1
$region0: #{tpu_custom_call.1}
  #allocation0 [shape = 'u32[]', space=smem, size = 0x4, offset = 0x4, fixed_abs, tag = 'smem constant byte address 0x4 - core index']
  #allocation1 [shape = 'u32[72,128]{1,0:T(1,128)}', space=vmem, size = 0x9000, scoped, tag = 'internal scratch']
  %s0 = inlined_call_operand.hbm [shape: f32[8,16], index: 0, kind: input, shape index: {}]
  %s1 = inlined_call_operand.hbm [shape: f32[3,128,128], index: 1, kind: input, shape index: {}]
  %s2 = inlined_call_operand.hbm [shape: f32[3,1,128], index: 2, kind: input, shape index: {}]
  %s3 = inlined_call_operand.hbm [shape: f32[8,8], index: 3, kind: output, shape index: {}]
  %s4 = sld [smem:[#allocation0]]
  $region34: #{tpu_custom_call.1} parent=0
    _
  %s6 = ssub.s32 1, %s4
  %s7 = scalar_select 0, %s6, %s4
  $region1: #{tpu_custom_call.1} parent=0
    #allocation2 [shape = 'u8[4096]{0}', space=vmem, size = 0x1000, scoped, tag = 'input window, operand 0, single buffered']
    #allocation3 [shape = 's32[1]{0}', space=sflag, size = 0x4, scoped, tag = 'scoped memory for tpu_custom_call.1']
    #allocation4 [shape = 's32[1]{0}', space=sflag, size = 0x4, scoped, tag = 'scoped memory for tpu_custom_call.1']
    #allocation5 [shape = 'u8[196608]{0}', space=vmem, size = 0x30000, scoped, tag = 'input window, operand 1, single buffered']
    #allocation6 [shape = 's32[1]{0}', space=sflag, size = 0x4, scoped, tag = 'scoped memory for tpu_custom_call.1']
    #allocation7 [shape = 'u8[1536]{0}', space=vmem, size = 0x800, scoped, tag = 'input window, operand 2, single buffered']
    #allocation8 [shape = 'u8[4096]{0}', space=vmem, size = 0x1000, scoped, tag = 'output window, operand 0, single buffered']
    %8 = vsyncpa [#allocation3], 0
    %9 = vsyncpa [#allocation6], 0
    %10 = vsyncpa [#allocation4], 0
    // Predicated region
    $region2: #{tpu_custom_call.1} parent=1 // pred_check
      _
    $region3: #{tpu_custom_call.1} parent=1 // pred_check_branch
      %12 = sbr.rel (0) target = $region5
    $region4: #{tpu_custom_call.1} parent=1 // pred_region
      %14 = vsyncadd [#allocation3], 0
      %s16 = sshll.u32 %s0, 4
      %s17 = int_to_ptr.hbm [resolvable:$true] %s16
      %s18 = sshll.u32 [#allocation2], 4
      %s19 = int_to_ptr.vmem [resolvable:$true] %s18
      %21 = dma.hbm_to_vmem [thread:$0]  %s17, 128, %s19, [#allocation3]
    $region5: #{tpu_custom_call.1} parent=1 // pred_fallthru
      _
    // Predicated region
    $region6: #{tpu_custom_call.1} parent=1 // pred_check
      _
    $region7: #{tpu_custom_call.1} parent=1 // pred_check_branch
      %23 = sbr.rel (0) target = $region9
    $region8: #{tpu_custom_call.1} parent=1 // pred_region
      %25 = vsyncadd [#allocation6], 0
      %s26 = sshll.u32 %s1, 4
      %s27 = int_to_ptr.hbm [resolvable:$true] %s26
      %s28 = sshll.u32 [#allocation5], 4
      %s29 = int_to_ptr.vmem [resolvable:$true] %s28
      %34 = dma.hbm_to_vmem [thread:$0]  %s27, 6144, %s29, [#allocation6], 128, 128, 8
    $region9: #{tpu_custom_call.1} parent=1 // pred_fallthru
      _
    // Predicated region
    $region10: #{tpu_custom_call.1} parent=1 // pred_check
      _
    $region11: #{tpu_custom_call.1} parent=1 // pred_check_branch
      %36 = sbr.rel (0) target = $region13
    $region12: #{tpu_custom_call.1} parent=1 // pred_region
      %38 = vsyncadd [#allocation6], 0
      %s39 = sshll.u32 %s2, 4
      %s40 = int_to_ptr.hbm [resolvable:$true] %s39
      %s41 = sshll.u32 [#allocation7], 4
      %s42 = int_to_ptr.vmem [resolvable:$true] %s41
      %47 = dma.hbm_to_vmem [thread:$0]  %s40, 48, %s42, [#allocation6], 16, 16, 1
    $region13: #{tpu_custom_call.1} parent=1 // pred_fallthru
      _
    // Predicated region
    $region14: #{tpu_custom_call.1} parent=1 // pred_check
      _
    $region15: #{tpu_custom_call.1} parent=1 // pred_check_branch
      %49 = sbr.rel (0) target = $region17
    $region16: #{tpu_custom_call.1} parent=1 // pred_region
      %51 = dma.done [#allocation3], 128
    $region17: #{tpu_custom_call.1} parent=1 // pred_fallthru
      _
    // Predicated region
    $region18: #{tpu_custom_call.1} parent=1 // pred_check
      _
    $region19: #{tpu_custom_call.1} parent=1 // pred_check_branch
      %53 = sbr.rel (0) target = $region21
    $region20: #{tpu_custom_call.1} parent=1 // pred_region
      %55 = dma.done [#allocation6], 6144
    $region21: #{tpu_custom_call.1} parent=1 // pred_fallthru
      _
    // Predicated region
    $region22: #{tpu_custom_call.1} parent=1 // pred_check
      _
    $region23: #{tpu_custom_call.1} parent=1 // pred_check_branch
      %57 = sbr.rel (0) target = $region25
    $region24: #{tpu_custom_call.1} parent=1 // pred_region
      %59 = dma.done [#allocation6], 48
    $region25: #{tpu_custom_call.1} parent=1 // pred_fallthru
      _
    %v60 = vld [vmem:[#allocation2] sm:$0xff]
    %vm61 = vcmask 130048
    %v62 = vsel %vm61, %v60, 0.0
    %v63 = vld [vmem:[#allocation5] sm:$0xff]
    %v64 = vld [vmem:[#allocation5 + $0x8] sm:$0xff]
    %v65 = vld [vmem:[#allocation5 + $0x10] sm:$0xff]
    %v66 = vld [vmem:[#allocation5 + $0x18] sm:$0xff]
    %v67 = vld [vmem:[#allocation5 + $0x20] sm:$0xff]
    %v68 = vld [vmem:[#allocation5 + $0x28] sm:$0xff]
    %v69 = vld [vmem:[#allocation5 + $0x30] sm:$0xff]
    %v70 = vld [vmem:[#allocation5 + $0x38] sm:$0xff]
    %v71 = vld [vmem:[#allocation5 + $0x40] sm:$0xff]
    %v72 = vld [vmem:[#allocation5 + $0x48] sm:$0xff]
    %v73 = vld [vmem:[#allocation5 + $0x50] sm:$0xff]
    %v74 = vld [vmem:[#allocation5 + $0x58] sm:$0xff]
    %v75 = vld [vmem:[#allocation5 + $0x60] sm:$0xff]
    %v76 = vld [vmem:[#allocation5 + $0x68] sm:$0xff]
    %v77 = vld [vmem:[#allocation5 + $0x70] sm:$0xff]
    %v78 = vld [vmem:[#allocation5 + $0x78] sm:$0xff]
    %v79 = vld [vmem:[#allocation7] sm:$0x1]
    %v81 = vperm.slane %v79, 0
    %83 = vmatpush.msra.mxu0 %v78
    %84 = vmatpush.msra.mxu0 %v77
    %85 = vmatpush.msra.mxu0 %v76
    %86 = vmatpush.msra.mxu0 %v75
    %87 = vmatpush.msra.mxu0 %v74
    %88 = vmatpush.msra.mxu0 %v73
    %89 = vmatpush.msra.mxu0 %v72
    %90 = vmatpush.msra.mxu0 %v71
    %91 = vmatpush.msra.mxu0 %v70
    %92 = vmatpush.msra.mxu0 %v69
    %93 = vmatpush.msra.mxu0 %v68
    %94 = vmatpush.msra.mxu0 %v67
    %95 = vmatpush.msra.mxu0 %v66
    %96 = vmatpush.msra.mxu0 %v65
    %97 = vmatpush.msra.mxu0 %v64
    %98 = vmatpush.msra.mxu0 %v63
    %99 = vmatmul.f32.gmra.mxu0 %v62
    %v100 = vpop.f32.mrf.mxu0
    %v101 = vadd.f32 %v81, %v100
    %102 = vdwg.mxu0
    %vm103 = vcmp.ge.f32.partialorder %v101, 0.0
    %v104 = vmul.f32 %v101, 0.01
    %v105 = vsel %vm103, %v101, %v104
    %s106 = scalar_lea.vmem [#allocation5], 128
    %v107 = vld [vmem:[%s106] sm:$0xff]
    %v108 = vld [vmem:[%s106 + $0x8] sm:$0xff]
    %v109 = vld [vmem:[%s106 + $0x10] sm:$0xff]
    %v110 = vld [vmem:[%s106 + $0x18] sm:$0xff]
    %v111 = vld [vmem:[%s106 + $0x20] sm:$0xff]
    %v112 = vld [vmem:[%s106 + $0x28] sm:$0xff]
    %v113 = vld [vmem:[%s106 + $0x30] sm:$0xff]
    %v114 = vld [vmem:[%s106 + $0x38] sm:$0xff]
    %v115 = vld [vmem:[%s106 + $0x40] sm:$0xff]
    %v116 = vld [vmem:[%s106 + $0x48] sm:$0xff]
    %v117 = vld [vmem:[%s106 + $0x50] sm:$0xff]
    %v118 = vld [vmem:[%s106 + $0x58] sm:$0xff]
    %v119 = vld [vmem:[%s106 + $0x60] sm:$0xff]
    %v120 = vld [vmem:[%s106 + $0x68] sm:$0xff]
    %v121 = vld [vmem:[%s106 + $0x70] sm:$0xff]
    %v122 = vld [vmem:[%s106 + $0x78] sm:$0xff]
    %s123 = scalar_lea.vmem [#allocation7], 1
    %v124 = vld [vmem:[%s123] sm:$0x1]
    %v126 = vperm.slane %v124, 0
    %128 = vmatpush.msra.mxu0 %v122
    %129 = vmatpush.msra.mxu0 %v121
    %130 = vmatpush.msra.mxu0 %v120
    %131 = vmatpush.msra.mxu0 %v119
    %132 = vmatpush.msra.mxu0 %v118
    %133 = vmatpush.msra.mxu0 %v117
    %134 = vmatpush.msra.mxu0 %v116
    %135 = vmatpush.msra.mxu0 %v115
    %136 = vmatpush.msra.mxu0 %v114
    %137 = vmatpush.msra.mxu0 %v113
    %138 = vmatpush.msra.mxu0 %v112
    %139 = vmatpush.msra.mxu0 %v111
    %140 = vmatpush.msra.mxu0 %v110
    %141 = vmatpush.msra.mxu0 %v109
    %142 = vmatpush.msra.mxu0 %v108
    %143 = vmatpush.msra.mxu0 %v107
    %144 = vmatmul.f32.gmra.mxu0 %v105
    %v145 = vpop.f32.mrf.mxu0
    %v146 = vadd.f32 %v126, %v145
    %147 = vdwg.mxu0
    %vm148 = vcmp.ge.f32.partialorder %v146, 0.0
    %v149 = vmul.f32 %v146, 0.01
    %v150 = vsel %vm148, %v146, %v149
    %s151 = scalar_lea.vmem [#allocation5], 256
    %v152 = vld [vmem:[%s151] sm:$0xff]
    %v153 = vld [vmem:[%s151 + $0x8] sm:$0xff]
    %v154 = vld [vmem:[%s151 + $0x10] sm:$0xff]
    %v155 = vld [vmem:[%s151 + $0x18] sm:$0xff]
    %v156 = vld [vmem:[%s151 + $0x20] sm:$0xff]
    %v157 = vld [vmem:[%s151 + $0x28] sm:$0xff]
    %v158 = vld [vmem:[%s151 + $0x30] sm:$0xff]
    %v159 = vld [vmem:[%s151 + $0x38] sm:$0xff]
    %v160 = vld [vmem:[%s151 + $0x40] sm:$0xff]
    %v161 = vld [vmem:[%s151 + $0x48] sm:$0xff]
    %v162 = vld [vmem:[%s151 + $0x50] sm:$0xff]
    %v163 = vld [vmem:[%s151 + $0x58] sm:$0xff]
    %v164 = vld [vmem:[%s151 + $0x60] sm:$0xff]
    %v165 = vld [vmem:[%s151 + $0x68] sm:$0xff]
    %v166 = vld [vmem:[%s151 + $0x70] sm:$0xff]
    %v167 = vld [vmem:[%s151 + $0x78] sm:$0xff]
    %s168 = scalar_lea.vmem [#allocation7], 2
    %v169 = vld [vmem:[%s168] sm:$0x1]
    %v171 = vperm.slane %v169, 0
    %173 = vmatpush.msra.mxu0 %v167
    %174 = vmatpush.msra.mxu0 %v166
    %175 = vmatpush.msra.mxu0 %v165
    %176 = vmatpush.msra.mxu0 %v164
    %177 = vmatpush.msra.mxu0 %v163
    %178 = vmatpush.msra.mxu0 %v162
    %179 = vmatpush.msra.mxu0 %v161
    %180 = vmatpush.msra.mxu0 %v160
    %181 = vmatpush.msra.mxu0 %v159
    %182 = vmatpush.msra.mxu0 %v158
    %183 = vmatpush.msra.mxu0 %v157
    %184 = vmatpush.msra.mxu0 %v156
    %185 = vmatpush.msra.mxu0 %v155
    %186 = vmatpush.msra.mxu0 %v154
    %187 = vmatpush.msra.mxu0 %v153
    %188 = vmatpush.msra.mxu0 %v152
    %189 = vmatmul.f32.gmra.mxu0 %v150
    %v190 = vpop.f32.mrf.mxu0
    %v191 = vadd.f32 %v171, %v190
    %192 = vdwg.mxu0
    %vm193 = vcmask 64512
    %194 = vst.msk [vmem:[#allocation8] sm:$0xff] %vm193, %v191
    // Predicated region
    $region26: #{tpu_custom_call.1} parent=1 // pred_check
      _
    $region27: #{tpu_custom_call.1} parent=1 // pred_check_branch
      %196 = sbr.rel (0) target = $region29
    $region28: #{tpu_custom_call.1} parent=1 // pred_region
      %198 = vsyncadd [#allocation4], 0
      %s200 = sshll.u32 [#allocation8], 4
      %s201 = int_to_ptr.vmem [resolvable:$true] %s200
      %s202 = sshll.u32 %s3, 4
      %s203 = int_to_ptr.hbm [resolvable:$true] %s202
      %205 = dma.vmem_to_hbm [thread:$0]  %s201, 128, %s203, [#allocation4]
    $region29: #{tpu_custom_call.1} parent=1 // pred_fallthru
      _
    // Predicated region
    $region30: #{tpu_custom_call.1} parent=1 // pred_check
      _
    $region31: #{tpu_custom_call.1} parent=1 // pred_check_branch
      %207 = sbr.rel (0) target = $region33
    $region32: #{tpu_custom_call.1} parent=1 // pred_region
      %209 = dma.done [#allocation4], 128
    $region33: #{tpu_custom_call.1} parent=1 // pred_fallthru
      _
    %210 = vsyncpa [#allocation3], 1
    %211 = vsyncpa [#allocation6], 1
    %212 = vsyncpa [#allocation4], 1

</llo_original>
